<compile_context>
chip_gen: v7x
topology: tpu7x:2x2x1
jax: 0.10.0
libtpu: 0.0.40
codegen_flags: <defaults>
</compile_context>

<pallas_src>
import functools

import jax
import jax.numpy as jnp
from jax.experimental import pallas as pl
from jax.experimental.pallas import tpu as pltpu


def _round_up(v: int, m: int) -> int:
    return ((v + m - 1) // m) * m


def _make_kernel(depth: int):
    """Kernel body for a fixed number of Linear+ReLU layers (`depth`)."""
    has_hidden = depth > 1

    def kernel(*refs):
        idx = 0
        x_ref = refs[idx]; idx += 1              # (TN, p)                 bf16
        w1_ref = refs[idx]; idx += 1             # (p, width)  fused W0@W1 bf16
        if has_hidden:
            wh_ref = refs[idx]; idx += 1         # (depth-1, width, width) bf16
        b_ref = refs[idx]; idx += 1              # (depth, width)          f32
        wl_ref = refs[idx]; idx += 1             # (1, width)              bf16
        o_ref = refs[idx]                        # (1, 1, TN)              f32

        biases = b_ref[...]                      # (depth, width) f32

        # Layer 1: projection + selection + first Linear, all folded into w1_ref.
        # x is already bf16 -> no per-tile cast, MXU-native operands, f32 accumulation.
        h = jnp.dot(x_ref[...], w1_ref[...], preferred_element_type=jnp.float32)
        h = jnp.maximum(h + biases[0:1, :], 0.0)

        # Hidden Linear+ReLU layers (static unroll over a tiny, fixed depth).
        for l in range(depth - 1):
            h = jnp.dot(h.astype(jnp.bfloat16), wh_ref[l],
                        preferred_element_type=jnp.float32)
            h = jnp.maximum(h + biases[l + 1:l + 2, :], 0.0)

        # Final Linear(width, 1): contract the width axis of both operands
        # (A @ B^T form) so the result comes out as a lane-dense (1, TN) row
        # with batch on lanes -> full-width unmasked stores.
        out = jax.lax.dot_general(
            wl_ref[...], h.astype(jnp.bfloat16),
            dimension_numbers=(((1,), (1,)), ((), ())),
            preferred_element_type=jnp.float32)          # (1, TN)
        o_ref[...] = out.reshape(o_ref.shape)

    return kernel


def fast_nn_forward(x, dp_mat, rs_mat, sel_logits, mlp_params, *, block_n=8192):
    """FactorAugmentedSparseThroughputNN forward in one Pallas call.

    x:          (N, p) float32
    dp_mat:     (p, r_bar) float32
    rs_mat:     (r_bar, p) float32 or None
    sel_logits: (p, r_bar) float32
    mlp_params: list of (W, b) with W:(in,out), b:(1,out); depth+1 entries.
    block_n:    max batch tile size; rounded to a multiple of 128 and capped at
                ~N/8 for large batches (v7x megacore + pipelining).
    """
    n, p = x.shape
    depth = len(mlp_params) - 1
    width = mlp_params[0][0].shape[1]

    # ---- parameter-only algebra, done once in XLA (not on the per-tile path) ----
    sm = jax.nn.softmax(sel_logits, axis=1)                           # (p, r_bar)
    sel = sm - dp_mat @ (rs_mat @ sm) if rs_mat is not None else sm   # (p, r_bar)
    w0 = jnp.concatenate([dp_mat, sel], axis=1)                       # (p, 2*r_bar)
    w1, b1 = mlp_params[0]
    w1f = (w0 @ w1).astype(jnp.bfloat16)                              # (p, width)

    hidden = mlp_params[1:-1]
    w_last, b_last = mlp_params[-1]
    wl = jnp.transpose(w_last).astype(jnp.bfloat16)                   # (1, width)
    b_all = jnp.concatenate([b1] + [b for _, b in hidden],
                            axis=0).astype(jnp.float32)               # (depth, width)

    # ---- batch tiling: lane-dense (multiple of 128) tiles ----
    n128 = _round_up(n, 128)
    tn = min(int(block_n), n128)
    # Keep >= ~8 grid steps for large batches (sharding across both v7x TCs plus
    # per-core double buffering), but never shrink below the ~1k-row roofline knee.
    n_over_8 = _round_up(pl.cdiv(n, 8), 128)
    if n_over_8 >= 1024:
        tn = min(tn, n_over_8)
    tn = max(_round_up(tn, 128), 128)
    g = pl.cdiv(n, tn)
    n_pad = g * tn

    # Stream x in bf16: halves the dominant HBM read.  The cast lives inside the same
    # jit as the pad/copy, so it fuses with x's producer rather than adding an HBM pass.
    x_bf = x.astype(jnp.bfloat16)
    x_p = jnp.pad(x_bf, ((0, n_pad - n), (0, 0))) if n_pad != n else x_bf
    # NOTE: padded tail rows produce harmless finite garbage; they are sliced off below.

    inputs = [x_p, w1f]
    in_specs = [
        pl.BlockSpec((tn, p), lambda i: (i, 0)),             # streamed batch tiles
        pl.BlockSpec((p, width), lambda i: (0, 0)),           # VMEM-resident weights
    ]
    if depth > 1:
        wh = jnp.stack([w for w, _ in hidden], axis=0).astype(jnp.bfloat16)
        inputs.append(wh)                                     # (depth-1, width, width)
        in_specs.append(pl.BlockSpec((depth - 1, width, width),
                                     lambda i: (0, 0, 0)))
    inputs += [b_all, wl]
    in_specs += [
        pl.BlockSpec((depth, width), lambda i: (0, 0)),
        pl.BlockSpec((1, width), lambda i: (0, 0)),
    ]
    out_spec = pl.BlockSpec((1, 1, tn), lambda i: (i, 0, 0))  # lane-dense output rows

    # ---- VMEM budget (lane-padded, double-buffered) & cost estimate ----
    lane = 128
    x_tile_b = tn * _round_up(p, lane) * 2                    # bf16 x tile in VMEM
    out_tile_b = _round_up(tn, lane) * 4                      # (1,1,tn) f32
    w_resident_b = (_round_up(p, 8) * _round_up(width, lane) * 2
                    + max(depth - 1, 0) * _round_up(width, 8) * _round_up(width, lane) * 2
                    + _round_up(depth, 8) * _round_up(width, lane) * 4
                    + 8 * _round_up(width, lane) * 2)
    vmem_needed = 2 * (x_tile_b + out_tile_b) + 2 * w_resident_b + (2 << 20)
    # Clamp: >= v5e's 16 MiB scoped default, well under v7x's 64 MiB physical VMEM.
    vmem_limit = int(min(max(vmem_needed, 16 << 20), 48 << 20))

    flops = 2 * n_pad * (p * width + (depth - 1) * width * width + width)
    bytes_accessed = (x_p.size * 2 + w1f.size * 2
                      + ((depth - 1) * width * width * 2 if depth > 1 else 0)
                      + b_all.size * 4 + wl.size * 2 + n_pad * 4)

    out = pl.pallas_call(
        _make_kernel(depth),
        out_shape=jax.ShapeDtypeStruct((g, 1, tn), jnp.float32),
        grid_spec=pltpu.PrefetchScalarGridSpec(
            num_scalar_prefetch=0,
            grid=(g,),
            in_specs=in_specs,
            out_specs=out_spec,
        ),
        compiler_params=pltpu.CompilerParams(
            dimension_semantics=("parallel",),
            vmem_limit_bytes=vmem_limit),
        cost_estimate=pl.CostEstimate(
            flops=flops, transcendentals=0, bytes_accessed=bytes_accessed),
    )(*inputs)

    # (g, 1, TN) lane-dense slab -> (N, 1) column, drop padded tail rows, add the
    # final scalar bias (folded out of the kernel).
    return out.reshape(n_pad, 1)[:n] + b_last.reshape(1, 1).astype(jnp.float32)


def init_params(key, p, r_bar, depth, width, use_reconstruct=True):
    """Deterministic synthetic parameter init mirroring the module's shapes."""
    keys = jax.random.split(key, 3 + 2 * (depth + 1))
    ki = iter(range(len(keys)))

    dp_mat = jax.random.normal(keys[next(ki)], (p, r_bar), jnp.float32) * 0.1
    rs_mat = (jax.random.normal(keys[next(ki)], (r_bar, p), jnp.float32) * 0.1
              if use_reconstruct else None)
    sel_logits = jax.random.uniform(keys[next(ki)], (p, r_bar), jnp.float32,
                                    minval=-1.0, maxval=1.0)
    # (`scale` parameter only enters regularization_loss, not the forward pass.)

    mlp_params = []
    dims = [(2 * r_bar, width)] + [(width, width)] * (depth - 1) + [(width, 1)]
    for (din, dout) in dims:
        bound = 1.0 / float(jnp.sqrt(float(din)))
        w = jax.random.uniform(keys[next(ki)], (din, dout), jnp.float32,
                               minval=-bound, maxval=bound)
        b = jax.random.uniform(keys[next(ki)], (1, dout), jnp.float32,
                               minval=-bound, maxval=bound)
        mlp_params.append((w, b))
    return dp_mat, rs_mat, sel_logits, mlp_params


def reference_forward(x, dp_mat, rs_mat, sel_logits, mlp_params):
    """Pure-JAX f32 reference of the original (unfused) forward pass."""
    x1 = x @ dp_mat
    sm = jax.nn.softmax(sel_logits, axis=1)
    resid = x - x1 @ rs_mat if rs_mat is not None else x
    x2 = resid @ sm
    h = jnp.concatenate([x1, x2], axis=-1)
    for i, (w, b) in enumerate(mlp_params):
        h = h @ w + b
        if i < len(mlp_params) - 1:
            h = jnp.maximum(h, 0.0)
    return h


if __name__ == "__main__":
    # Small shapes consistent with the module: p=32 covariates, r_bar=8 factors,
    # depth=2, width=32.  N=200 with block_n=128 exercises the batch grid (2 tiles)
    # and the padded (ragged) tail; production use would leave block_n at its 8192
    # default.
    N, p, r_bar, depth, width = 200, 32, 8, 2, 32

    key = jax.random.PRNGKey(0)
    k_x, k_param = jax.random.split(key)
    x = jax.random.normal(k_x, (N, p), jnp.float32)

    dp_mat, rs_mat, sel_logits, mlp_params = init_params(
        k_param, p, r_bar, depth, width, use_reconstruct=True)

    fwd = jax.jit(functools.partial(fast_nn_forward, block_n=128))
    out = jax.block_until_ready(fwd(x, dp_mat, rs_mat, sel_logits, mlp_params))

    ref = reference_forward(x, dp_mat, rs_mat, sel_logits, mlp_params)
    assert out.shape == (N, 1)
    # bf16 MXU operands (x, activations, weights) -> relaxed tolerance vs f32 reference.
    assert jnp.allclose(out, ref, atol=5e-2, rtol=5e-2), "mismatch vs reference"

    print("KERNEL_OK")
</pallas_src>

<mosaic_0001>
module attributes {stable_mosaic.version = 11 : i64} {
  func.func @kernel(%arg0: i32, %arg1: memref<128x32xbf16, #tpu.memory_space<vmem>>, %arg2: memref<32x32xbf16, #tpu.memory_space<vmem>>, %arg3: memref<1x32x32xbf16, #tpu.memory_space<vmem>>, %arg4: memref<2x32xf32, #tpu.memory_space<vmem>>, %arg5: memref<1x32xbf16, #tpu.memory_space<vmem>>, %arg6: memref<1x1x128xf32, #tpu.memory_space<vmem>>) attributes {dimension_semantics = [#tpu.dimension_semantics<parallel>], iteration_bounds = array<i64: 2>, scalar_prefetch = 0 : i64, scratch_operands = 0 : i64, tpu.core_type = #tpu.core_type<tc>, window_params = [{transform_indices = @transform_0, window_bounds = array<i64: 128, 32>}, {pipeline_mode = #tpu.pipeline_mode<synchronous>, transform_indices = @transform_1, window_bounds = array<i64: 32, 32>}, {pipeline_mode = #tpu.pipeline_mode<synchronous>, transform_indices = @transform_2, window_bounds = array<i64: 1, 32, 32>}, {pipeline_mode = #tpu.pipeline_mode<synchronous>, transform_indices = @transform_3, window_bounds = array<i64: 2, 32>}, {pipeline_mode = #tpu.pipeline_mode<synchronous>, transform_indices = @transform_4, window_bounds = array<i64: 1, 32>}, {transform_indices = @transform_5, window_bounds = array<i64: 1, 1, 128>}]} {
    %c0 = arith.constant 0 : index
    %c0_0 = arith.constant 0 : index
    %0 = vector.load %arg4[%c0, %c0_0] : memref<2x32xf32, #tpu.memory_space<vmem>>, vector<2x32xf32>
    %c0_1 = arith.constant 0 : index
    %c0_2 = arith.constant 0 : index
    %1 = vector.load %arg1[%c0_1, %c0_2] : memref<128x32xbf16, #tpu.memory_space<vmem>>, vector<128x32xbf16>
    %c0_3 = arith.constant 0 : index
    %c0_4 = arith.constant 0 : index
    %2 = vector.load %arg2[%c0_3, %c0_4] : memref<32x32xbf16, #tpu.memory_space<vmem>>, vector<32x32xbf16>
    %cst = arith.constant dense<0.000000e+00> : vector<128x32xf32>
    %3 = tpu.matmul %1, %2, %cst {dimension_numbers = #tpu.dot_dimension_numbers<[1], [0], [0], [1], [0, 0, 1, 1], [], []>} : vector<128x32xbf16>, vector<32x32xbf16>, vector<128x32xf32> -> vector<128x32xf32>
    %4 = vector.extract_strided_slice %0 {offsets = [0, 0], sizes = [1, 32], strides = [1, 1]} : vector<2x32xf32> to vector<1x32xf32>
    %5 = vector.broadcast %4 : vector<1x32xf32> to vector<128x32xf32>
    %6 = arith.addf %3, %5 : vector<128x32xf32>
    %cst_5 = arith.constant 0.000000e+00 : f32
    %7 = vector.broadcast %cst_5 : f32 to vector<128x32xf32>
    %8 = arith.maximumf %6, %7 : vector<128x32xf32>
    %9 = arith.truncf %8 : vector<128x32xf32> to vector<128x32xbf16>
    %c0_6 = arith.constant 0 : index
    %c0_7 = arith.constant 0 : index
    %c0_8 = arith.constant 0 : index
    %10 = vector.load %arg3[%c0_6, %c0_7, %c0_8] : memref<1x32x32xbf16, #tpu.memory_space<vmem>>, vector<1x32x32xbf16>
    %11 = vector.shape_cast %10 : vector<1x32x32xbf16> to vector<32x32xbf16>
    %cst_9 = arith.constant dense<0.000000e+00> : vector<128x32xf32>
    %12 = tpu.matmul %9, %11, %cst_9 {dimension_numbers = #tpu.dot_dimension_numbers<[1], [0], [0], [1], [0, 0, 1, 1], [], []>} : vector<128x32xbf16>, vector<32x32xbf16>, vector<128x32xf32> -> vector<128x32xf32>
    %13 = vector.extract_strided_slice %0 {offsets = [1, 0], sizes = [1, 32], strides = [1, 1]} : vector<2x32xf32> to vector<1x32xf32>
    %14 = vector.broadcast %13 : vector<1x32xf32> to vector<128x32xf32>
    %15 = arith.addf %12, %14 : vector<128x32xf32>
    %cst_10 = arith.constant 0.000000e+00 : f32
    %16 = vector.broadcast %cst_10 : f32 to vector<128x32xf32>
    %17 = arith.maximumf %15, %16 : vector<128x32xf32>
    %c0_11 = arith.constant 0 : index
    %c0_12 = arith.constant 0 : index
    %18 = vector.load %arg5[%c0_11, %c0_12] : memref<1x32xbf16, #tpu.memory_space<vmem>>, vector<1x32xbf16>
    %19 = arith.truncf %17 : vector<128x32xf32> to vector<128x32xbf16>
    %cst_13 = arith.constant dense<0.000000e+00> : vector<1x128xf32>
    %20 = tpu.matmul %18, %19, %cst_13 {dimension_numbers = #tpu.dot_dimension_numbers<[1], [1], [0], [0], [0, 0, 1, 0], [], []>} : vector<1x32xbf16>, vector<128x32xbf16>, vector<1x128xf32> -> vector<1x128xf32>
    %21 = vector.shape_cast %20 : vector<1x128xf32> to vector<1x1x128xf32>
    %c0_14 = arith.constant 0 : index
    %c0_15 = arith.constant 0 : index
    %c0_16 = arith.constant 0 : index
    %22 = vector.load %arg6[%c0_14, %c0_15, %c0_16] : memref<1x1x128xf32, #tpu.memory_space<vmem>>, vector<1x1x128xf32>
    tpu.vector_store %arg6[%c0_14, %c0_15, %c0_16], %21 {strides = array<i32>} : memref<1x1x128xf32, #tpu.memory_space<vmem>>, vector<1x1x128xf32>,
    return
  }
  func.func @transform_0(%arg0: i32) -> (i32, i32) {
    %c0_i32 = arith.constant 0 : i32
    %c0_i32_0 = arith.constant 0 : i32
    return %arg0, %c0_i32 : i32, i32
  }
  func.func @transform_1(%arg0: i32) -> (i32, i32) {
    %c0_i32 = arith.constant 0 : i32
    %c0_i32_0 = arith.constant 0 : i32
    %c0_i32_1 = arith.constant 0 : i32
    return %c0_i32, %c0_i32_0 : i32, i32
  }
  func.func @transform_2(%arg0: i32) -> (i32, i32, i32) {
    %c0_i32 = arith.constant 0 : i32
    %c0_i32_0 = arith.constant 0 : i32
    %c0_i32_1 = arith.constant 0 : i32
    %c0_i32_2 = arith.constant 0 : i32
    return %c0_i32, %c0_i32_0, %c0_i32_1 : i32, i32, i32
  }
  func.func @transform_3(%arg0: i32) -> (i32, i32) {
    %c0_i32 = arith.constant 0 : i32
    %c0_i32_0 = arith.constant 0 : i32
    %c0_i32_1 = arith.constant 0 : i32
    return %c0_i32, %c0_i32_0 : i32, i32
  }
  func.func @transform_4(%arg0: i32) -> (i32, i32) {
    %c0_i32 = arith.constant 0 : i32
    %c0_i32_0 = arith.constant 0 : i32
    %c0_i32_1 = arith.constant 0 : i32
    return %c0_i32, %c0_i32_0 : i32, i32
  }
  func.func @transform_5(%arg0: i32) -> (i32, i32, i32) {
    %c0_i32 = arith.constant 0 : i32
    %c0_i32_0 = arith.constant 0 : i32
    %c0_i32_1 = arith.constant 0 : i32
    return %arg0, %c0_i32, %c0_i32_0 : i32, i32, i32
  }
}

</mosaic_0001>

<llo_original>
// kernel: fast_nn_forward.1
$region0: #{fast_nn_forward.1}
  #allocation0 [shape = 'u32[]', space=smem, size = 0x4, offset = 0x4, fixed_abs, tag = 'smem constant byte address 0x4 - core index']
  #allocation1 [shape = 'u32[144,128]{1,0:T(1,128)}', space=vmem, size = 0x12000, scoped, tag = 'internal scratch']
  %s0 = inlined_call_operand.vmem [shape: bf16[256,32], index: 0, kind: input, shape index: {}]
  %s1 = inlined_call_operand.vmem [shape: bf16[32,32], index: 1, kind: input, shape index: {}]
  %s2 = inlined_call_operand.vmem [shape: bf16[1,32,32], index: 2, kind: input, shape index: {}]
  %s3 = inlined_call_operand.vmem [shape: f32[2,32], index: 3, kind: input, shape index: {}]
  %s4 = inlined_call_operand.vmem [shape: bf16[1,32], index: 4, kind: input, shape index: {}]
  %s5 = inlined_call_operand.vmem [shape: f32[2,1,128], index: 5, kind: output, shape index: {}]
  %s6 = sld [smem:[#allocation0]]
  $region53: #{fast_nn_forward.1} parent=0
    _
  %s8 = ssub.s32 1, %s6
  %s9 = scalar_select 0, %s8, %s6
  loop: start=0, step=1, limit=4
  $region2: #{fast_nn_forward.1} parent=0 // loop_pre_header
    _
  $region3: #{fast_nn_forward.1} parent=0 // loop_header
    %s11 = sphi 0, %s15
    %p12 = scmp.ge.s32.totalorder %s11, 4
    %s21 = sphi 0, %s23
    %s24 = sphi 0, %s21
    %s25 = sphi 0, %s24
    %s41 = sphi 0, %s25
    %s45 = sphi 0, %s45
    %s47 = sphi 0, %s45
    %s48 = sphi 0, %s47
    %s62 = sphi 0, %s48
    %s66 = sphi 0, %s66
    %s68 = sphi 0, %s66
    %s69 = sphi 0, %s68
    %s83 = sphi 0, %s69
    %s87 = sphi 0, %s87
    %s89 = sphi 0, %s87
    %s90 = sphi 0, %s89
    %s104 = sphi 0, %s90
    %s108 = sphi 0, %s108
    %s110 = sphi 0, %s108
    %s111 = sphi 0, %s110
    %s125 = sphi 0, %s111
    %s131 = sphi 0, %s133
    %s134 = sphi 0, %s131
    %s135 = sphi 0, %s134
    %s151 = sphi 0, %s135
  $region4: #{fast_nn_forward.1} parent=0 // loop_header_branch
    %14 = sbr.rel (%p12) target = $region8
  $region5: #{fast_nn_forward.1} parent=0 // loop_body
    %s16 = ssub.s32 %s11, 1
    %s17 = ssub.s32 %s11, 2
    %s18 = sadd.s32 %s11, 1
    %s19 = ssub.s32 %s11, %s18
    %p20 = scmp.eq.s32.totalorder %s19, 0
    %s22 = sadd.s32 %s21, 1
    %s23 = scalar_select %p20, %s21, %s22
    %p26 = pneg %p20
    %p27 = scmp.eq.s32.totalorder %s11, 1
    %p28 = por %p26, %p27
    %p29 = scmp.ne.s32.totalorder %s21, %s24
    %p30 = scmp.eq.s32.totalorder %s11, 0
    %p31 = por %p29, %p30
    %p32 = scmp.ne.s32.totalorder %s21, %s24
    %p33 = scmp.eq.s32.totalorder %s16, 1
    %p34 = por %p32, %p33
    %p35 = scmp.ne.s32.totalorder %s24, %s25
    %p36 = scmp.eq.s32.totalorder %s16, 0
    %p37 = por %p35, %p36
    %p38 = scmp.ne.s32.totalorder %s24, %s25
    %p39 = scmp.eq.s32.totalorder %s17, 1
    %p40 = por %p38, %p39
    %p42 = scmp.ne.s32.totalorder %s25, %s41
    %p43 = scmp.eq.s32.totalorder %s17, 0
    %p44 = por %p42, %p43
    %s46 = sadd.s32 %s45, 1
    %p49 = scmp.eq.s32.totalorder %s11, 1
    %p50 = scmp.ne.s32.totalorder %s45, %s47
    %p51 = scmp.eq.s32.totalorder %s11, 0
    %p52 = por %p50, %p51
    %p53 = scmp.ne.s32.totalorder %s45, %s47
    %p54 = scmp.eq.s32.totalorder %s16, 1
    %p55 = por %p53, %p54
    %p56 = scmp.ne.s32.totalorder %s47, %s48
    %p57 = scmp.eq.s32.totalorder %s16, 0
    %p58 = por %p56, %p57
    %p59 = scmp.ne.s32.totalorder %s47, %s48
    %p60 = scmp.eq.s32.totalorder %s17, 1
    %p61 = por %p59, %p60
    %p63 = scmp.ne.s32.totalorder %s48, %s62
    %p64 = scmp.eq.s32.totalorder %s17, 0
    %p65 = por %p63, %p64
    %s67 = sadd.s32 %s66, 1
    %p70 = scmp.eq.s32.totalorder %s11, 1
    %p71 = scmp.ne.s32.totalorder %s66, %s68
    %p72 = scmp.eq.s32.totalorder %s11, 0
    %p73 = por %p71, %p72
    %p74 = scmp.ne.s32.totalorder %s66, %s68
    %p75 = scmp.eq.s32.totalorder %s16, 1
    %p76 = por %p74, %p75
    %p77 = scmp.ne.s32.totalorder %s68, %s69
    %p78 = scmp.eq.s32.totalorder %s16, 0
    %p79 = por %p77, %p78
    %p80 = scmp.ne.s32.totalorder %s68, %s69
    %p81 = scmp.eq.s32.totalorder %s17, 1
    %p82 = por %p80, %p81
    %p84 = scmp.ne.s32.totalorder %s69, %s83
    %p85 = scmp.eq.s32.totalorder %s17, 0
    %p86 = por %p84, %p85
    %s88 = sadd.s32 %s87, 1
    %p91 = scmp.eq.s32.totalorder %s11, 1
    %p92 = scmp.ne.s32.totalorder %s87, %s89
    %p93 = scmp.eq.s32.totalorder %s11, 0
    %p94 = por %p92, %p93
    %p95 = scmp.ne.s32.totalorder %s87, %s89
    %p96 = scmp.eq.s32.totalorder %s16, 1
    %p97 = por %p95, %p96
    %p98 = scmp.ne.s32.totalorder %s89, %s90
    %p99 = scmp.eq.s32.totalorder %s16, 0
    %p100 = por %p98, %p99
    %p101 = scmp.ne.s32.totalorder %s89, %s90
    %p102 = scmp.eq.s32.totalorder %s17, 1
    %p103 = por %p101, %p102
    %p105 = scmp.ne.s32.totalorder %s90, %s104
    %p106 = scmp.eq.s32.totalorder %s17, 0
    %p107 = por %p105, %p106
    %s109 = sadd.s32 %s108, 1
    %p112 = scmp.eq.s32.totalorder %s11, 1
    %p113 = scmp.ne.s32.totalorder %s108, %s110
    %p114 = scmp.eq.s32.totalorder %s11, 0
    %p115 = por %p113, %p114
    %p116 = scmp.ne.s32.totalorder %s108, %s110
    %p117 = scmp.eq.s32.totalorder %s16, 1
    %p118 = por %p116, %p117
    %p119 = scmp.ne.s32.totalorder %s110, %s111
    %p120 = scmp.eq.s32.totalorder %s16, 0
    %p121 = por %p119, %p120
    %p122 = scmp.ne.s32.totalorder %s110, %s111
    %p123 = scmp.eq.s32.totalorder %s17, 1
    %p124 = por %p122, %p123
    %p126 = scmp.ne.s32.totalorder %s111, %s125
    %p127 = scmp.eq.s32.totalorder %s17, 0
    %p128 = por %p126, %p127
    %s129 = ssub.s32 %s11, %s18
    %p130 = scmp.eq.s32.totalorder %s129, 0
    %s132 = sadd.s32 %s131, 1
    %s133 = scalar_select %p130, %s131, %s132
    %p136 = pneg %p130
    %p137 = scmp.eq.s32.totalorder %s11, 1
    %p138 = por %p136, %p137
    %p139 = scmp.ne.s32.totalorder %s131, %s134
    %p140 = scmp.eq.s32.totalorder %s11, 0
    %p141 = por %p139, %p140
    %p142 = scmp.ne.s32.totalorder %s131, %s134
    %p143 = scmp.eq.s32.totalorder %s16, 1
    %p144 = por %p142, %p143
    %p145 = scmp.ne.s32.totalorder %s134, %s135
    %p146 = scmp.eq.s32.totalorder %s16, 0
    %p147 = por %p145, %p146
    %p148 = scmp.ne.s32.totalorder %s134, %s135
    %p149 = scmp.eq.s32.totalorder %s17, 1
    %p150 = por %p148, %p149
    %p152 = scmp.ne.s32.totalorder %s135, %s151
    %p153 = scmp.eq.s32.totalorder %s17, 0
    %p154 = por %p152, %p153
    %p155 = scmp.le.s32.totalorder 1, %s11
    %p156 = scmp.lt.s32.totalorder %s11, 3
    %p157 = pnand %p155, %p156
    %p158 = pneg %p157
    // Predicated region
    $region9: #{fast_nn_forward.1} parent=5 // pred_check
      _
    $region10: #{fast_nn_forward.1} parent=5 // pred_check_branch
      %160 = sbr.rel (%p157) target = $region12
    $region11: #{fast_nn_forward.1} parent=5 // pred_region
      %s161 = ssub.s32 %s11, 1
      // Predicated region
      $region13: #{fast_nn_forward.1} parent=11 // pred_check
        %p162 = pneg %p58
      $region14: #{fast_nn_forward.1} parent=11 // pred_check_branch
        %164 = sbr.rel (%p162) target = $region16
      $region15: #{fast_nn_forward.1} parent=11 // pred_region
        _
      $region16: #{fast_nn_forward.1} parent=11 // pred_fallthru
        _
      // Predicated region
      $region17: #{fast_nn_forward.1} parent=11 // pred_check
        %p165 = pneg %p79
      $region18: #{fast_nn_forward.1} parent=11 // pred_check_branch
        %167 = sbr.rel (%p165) target = $region20
      $region19: #{fast_nn_forward.1} parent=11 // pred_region
        _
      $region20: #{fast_nn_forward.1} parent=11 // pred_fallthru
        _
      // Predicated region
      $region21: #{fast_nn_forward.1} parent=11 // pred_check
        %p168 = pneg %p100
      $region22: #{fast_nn_forward.1} parent=11 // pred_check_branch
        %170 = sbr.rel (%p168) target = $region24
      $region23: #{fast_nn_forward.1} parent=11 // pred_region
        _
      $region24: #{fast_nn_forward.1} parent=11 // pred_fallthru
        _
      // Predicated region
      $region25: #{fast_nn_forward.1} parent=11 // pred_check
        %p171 = pneg %p121
      $region26: #{fast_nn_forward.1} parent=11 // pred_check_branch
        %173 = sbr.rel (%p171) target = $region28
      $region27: #{fast_nn_forward.1} parent=11 // pred_region
        _
      $region28: #{fast_nn_forward.1} parent=11 // pred_fallthru
        _
    $region12: #{fast_nn_forward.1} parent=5 // pred_fallthru
      _
    %p174 = scmp.lt.s32.totalorder %s11, 2
    // Predicated region
    $region29: #{fast_nn_forward.1} parent=5 // pred_check
      %p175 = pneg %p174
    $region30: #{fast_nn_forward.1} parent=5 // pred_check_branch
      %177 = sbr.rel (%p175) target = $region32
    $region31: #{fast_nn_forward.1} parent=5 // pred_region
      // Predicated region
      $region33: #{fast_nn_forward.1} parent=31 // pred_check
        %p178 = pneg %p31
      $region34: #{fast_nn_forward.1} parent=31 // pred_check_branch
        %180 = sbr.rel (%p178) target = $region36
      $region35: #{fast_nn_forward.1} parent=31 // pred_region
        %s181 = smul.u32 16, %s11
        %p182 = scmp.lt.s32.totalorder %s181, 31
        %s183 = scalar_select %p182, %s181, 31
        %s184 = smul.addr %s183, 4
        %s185 = scalar_lea.vmem %s0, %s184
        %s186 = smul.u32 16, %s11
      $region36: #{fast_nn_forward.1} parent=31 // pred_fallthru
        _
    $region32: #{fast_nn_forward.1} parent=5 // pred_fallthru
      _
    %p187 = scmp.le.s32.totalorder 1, %s11
    %p188 = scmp.lt.s32.totalorder %s11, 3
    %p189 = pnand %p187, %p188
    %p190 = pneg %p189
    // Predicated region
    $region37: #{fast_nn_forward.1} parent=5 // pred_check
      _
    $region38: #{fast_nn_forward.1} parent=5 // pred_check_branch
      %192 = sbr.rel (%p189) target = $region40
    $region39: #{fast_nn_forward.1} parent=5 // pred_region
      %s193 = ssub.s32 %s11, 1
      %s194 = smul.u32 16, %s16
      %p195 = scmp.lt.s32.totalorder %s194, 31
      %s196 = scalar_select %p195, %s194, 31
      %s197 = smul.addr %s196, 4
      %s198 = scalar_lea.vmem %s0, %s197
      %p199 = pneg %p37
      %p200 = pneg %p34
      %p201 = pneg %p58
      %p202 = pneg %p55
      %p203 = pneg %p79
      %p204 = pneg %p76
      %p205 = pneg %p100
      %p206 = pneg %p97
      %p207 = pneg %p121
      %p208 = pneg %p118
      %p209 = pneg %p147
      %p210 = pneg %p144
      %p211 = scmp.lt.s32.totalorder %s16, 1
      %s212 = scalar_select %p211, %s16, 1
      %s213 = scalar_lea.vmem %s5, %s212
      %s214 = smul.u32 16, %s16
      %p215 = scmp.lt.s32.totalorder %s214, 31
      %s216 = scalar_select %p215, %s214, 31
      %s217 = smul.addr %s216, 4
      %s218 = scalar_lea.vmem %s0, %s217
      %s219 = smul.u32 16, %s16
      %p220 = scmp.lt.s32.totalorder %s16, 1
      %s221 = scalar_select %p220, %s16, 1
      %s222 = scalar_lea.vmem %s5, %s221
      %v224 = vld [vmem:[%s3] sm:$0x3]
      %v225 = vld [vmem:[%s218] sm:$0xf]
      %v226 = vld [vmem:[%s218 + $0x4] sm:$0xf]
      %v227 = vld [vmem:[%s218 + $0x8] sm:$0xf]
      %v228 = vld [vmem:[%s218 + $0xc] sm:$0xf]
      %v229 = vld [vmem:[%s218 + $0x10] sm:$0xf]
      %v230 = vld [vmem:[%s218 + $0x14] sm:$0xf]
      %v231 = vld [vmem:[%s218 + $0x18] sm:$0xf]
      %v232 = vld [vmem:[%s218 + $0x1c] sm:$0xf]
      %v233 = vld [vmem:[%s218 + $0x20] sm:$0xf]
      %v234 = vld [vmem:[%s218 + $0x24] sm:$0xf]
      %v235 = vld [vmem:[%s218 + $0x28] sm:$0xf]
      %v236 = vld [vmem:[%s218 + $0x2c] sm:$0xf]
      %v237 = vld [vmem:[%s218 + $0x30] sm:$0xf]
      %v238 = vld [vmem:[%s218 + $0x34] sm:$0xf]
      %v239 = vld [vmem:[%s218 + $0x38] sm:$0xf]
      %v240 = vld [vmem:[%s218 + $0x3c] sm:$0xf]
      %v241 = vld [vmem:[%s1] sm:$0xf]
      %v242 = vld [vmem:[%s1 + $0x4] sm:$0xf]
      %v243 = vld [vmem:[%s1 + $0x8] sm:$0xf]
      %v244 = vld [vmem:[%s1 + $0xc] sm:$0xf]
      %v245 = vlaneseq
      %v246 = vshrl.u32 %v245, 7
      %v247 = vsub.s32 0, %v246
      %v248 = vrot.slane %v224, %v247
      %v265 = vunpack.c.l.b16 %v225
      %v266 = vunpack.c.l.b16 %v226
      %v267 = vunpack.c.l.b16 %v227
      %v268 = vunpack.c.l.b16 %v228
      %v269 = vunpack.c.l.b16 %v229
      %v270 = vunpack.c.l.b16 %v230
      %v271 = vunpack.c.l.b16 %v231
      %v272 = vunpack.c.l.b16 %v232
      %v273 = vunpack.c.l.b16 %v233
      %v274 = vunpack.c.l.b16 %v234
      %v275 = vunpack.c.l.b16 %v235
      %v276 = vunpack.c.l.b16 %v236
      %v277 = vunpack.c.l.b16 %v237
      %v278 = vunpack.c.l.b16 %v238
      %v279 = vunpack.c.l.b16 %v239
      %v280 = vunpack.c.l.b16 %v240
      %v281 = vpack.c.b16 %v266, %v265
      %v282 = vpack.c.b16 %v268, %v267
      %v283 = vpack.c.b16 %v270, %v269
      %v284 = vpack.c.b16 %v272, %v271
      %v285 = vpack.c.b16 %v274, %v273
      %v286 = vpack.c.b16 %v276, %v275
      %v287 = vpack.c.b16 %v278, %v277
      %v288 = vpack.c.b16 %v280, %v279
      %v293 = vunpack.c.l.b16 %v241
      %v294 = vunpack.c.l.b16 %v242
      %v295 = vunpack.c.l.b16 %v243
      %v296 = vunpack.c.l.b16 %v244
      %v297 = vpack.c.b16 %v294, %v293
      %v298 = vpack.c.b16 %v296, %v295
      %vm301 = vcmask 261120
      %v303 = vsel %vm301, %v281, 0
      %v306 = vsel %vm301, %v282, 0
      %v309 = vsel %vm301, %v283, 0
      %v312 = vsel %vm301, %v284, 0
      %v315 = vsel %vm301, %v285, 0
      %v318 = vsel %vm301, %v286, 0
      %v321 = vsel %vm301, %v287, 0
      %v324 = vsel %vm301, %v288, 0
      %326 = vmatprep.subr.bf16.mxu0 0
      %327 = vmatpush1.bf16.msra.mxu0 %v297
      %328 = vmatprep.subr.bf16.mxu0 0
      %329 = vmatpush1.bf16.msra.mxu0 %v298
      %330 = vmatprep.subr.bf16.mxu0 0
      %331 = vmatpush1.bf16.msra.mxu0 0
      %332 = vmatprep.subr.bf16.mxu0 0
      %333 = vmatpush1.bf16.msra.mxu0 0
      %334 = vmatprep.subr.bf16.mxu0 0
      %335 = vmatpush1.bf16.msra.mxu0 0
      %336 = vmatprep.subr.bf16.mxu0 0
      %337 = vmatpush1.bf16.msra.mxu0 0
      %338 = vmatprep.subr.bf16.mxu0 0
      %339 = vmatpush1.bf16.msra.mxu0 0
      %340 = vmatprep.subr.bf16.mxu0 0
      %341 = vmatpush1.bf16.msra.mxu0 0
      %342 = vmatprep.subr.bf16.mxu0 0
      %343 = vmatpush1.bf16.msra.mxu0 0
      %344 = vmatprep.subr.bf16.mxu0 0
      %345 = vmatpush1.bf16.msra.mxu0 0
      %346 = vmatprep.subr.bf16.mxu0 0
      %347 = vmatpush1.bf16.msra.mxu0 0
      %348 = vmatprep.subr.bf16.mxu0 0
      %349 = vmatpush1.bf16.msra.mxu0 0
      %350 = vmatprep.subr.bf16.mxu0 0
      %351 = vmatpush1.bf16.msra.mxu0 0
      %352 = vmatprep.subr.bf16.mxu0 0
      %353 = vmatpush1.bf16.msra.mxu0 0
      %354 = vmatprep.subr.bf16.mxu0 0
      %355 = vmatpush1.bf16.msra.mxu0 0
      %356 = vmatprep.subr.bf16.mxu0 0
      %357 = vmatpush1.bf16.msra.mxu0 0
      %358 = vmatprep.mubr.bf16.mxu0 0
      %359 = vmatmul.mubr.bf16.gmra.mrb[0].mxu0 %v303
      %v360 = vpop.f32.mrb[0].mxu0
      %v361 = vadd.f32 %v248, %v360
      %v362 = vpop.f32.mrb[0].mxu0
      %v363 = vpop.f32.mrb[0].mxu0
      %v364 = vadd.f32 %v248, %v363
      %v365 = vpop.f32.mrb[0].mxu0
      %366 = vmatprep.mubr.bf16.mxu0 0
      %367 = vmatmul.mubr.bf16.gmra.mrb[0].mxu0 %v306
      %v368 = vpop.f32.mrb[0].mxu0
      %v369 = vadd.f32 %v248, %v368
      %v370 = vpop.f32.mrb[0].mxu0
      %v371 = vpop.f32.mrb[0].mxu0
      %v372 = vadd.f32 %v248, %v371
      %v373 = vpop.f32.mrb[0].mxu0
      %374 = vmatprep.mubr.bf16.mxu0 0
      %375 = vmatmul.mubr.bf16.gmra.mrb[0].mxu0 %v309
      %v376 = vpop.f32.mrb[0].mxu0
      %v377 = vadd.f32 %v248, %v376
      %v378 = vpop.f32.mrb[0].mxu0
      %v379 = vpop.f32.mrb[0].mxu0
      %v380 = vadd.f32 %v248, %v379
      %v381 = vpop.f32.mrb[0].mxu0
      %382 = vmatprep.mubr.bf16.mxu0 0
      %383 = vmatmul.mubr.bf16.gmra.mrb[0].mxu0 %v312
      %v384 = vpop.f32.mrb[0].mxu0
      %v385 = vadd.f32 %v248, %v384
      %v386 = vpop.f32.mrb[0].mxu0
      %v387 = vpop.f32.mrb[0].mxu0
      %v388 = vadd.f32 %v248, %v387
      %v389 = vpop.f32.mrb[0].mxu0
      %390 = vmatprep.mubr.bf16.mxu0 0
      %391 = vmatmul.mubr.bf16.gmra.mrb[0].mxu0 %v315
      %v392 = vpop.f32.mrb[0].mxu0
      %v393 = vadd.f32 %v248, %v392
      %v394 = vpop.f32.mrb[0].mxu0
      %v395 = vpop.f32.mrb[0].mxu0
      %v396 = vadd.f32 %v248, %v395
      %v397 = vpop.f32.mrb[0].mxu0
      %398 = vmatprep.mubr.bf16.mxu0 0
      %399 = vmatmul.mubr.bf16.gmra.mrb[0].mxu0 %v318
      %v400 = vpop.f32.mrb[0].mxu0
      %v401 = vadd.f32 %v248, %v400
      %v402 = vpop.f32.mrb[0].mxu0
      %v403 = vpop.f32.mrb[0].mxu0
      %v404 = vadd.f32 %v248, %v403
      %v405 = vpop.f32.mrb[0].mxu0
      %406 = vmatprep.mubr.bf16.mxu0 0
      %407 = vmatmul.mubr.bf16.gmra.mrb[0].mxu0 %v321
      %v408 = vpop.f32.mrb[0].mxu0
      %v409 = vadd.f32 %v248, %v408
      %v410 = vpop.f32.mrb[0].mxu0
      %v411 = vpop.f32.mrb[0].mxu0
      %v412 = vadd.f32 %v248, %v411
      %v413 = vpop.f32.mrb[0].mxu0
      %414 = vmatprep.mubr.bf16.mxu0 0
      %415 = vmatmul.mubr.bf16.gmra.mrb[0].mxu0 %v324
      %v416 = vpop.f32.mrb[0].mxu0
      %v417 = vadd.f32 %v248, %v416
      %v418 = vpop.f32.mrb[0].mxu0
      %v419 = vpop.f32.mrb[0].mxu0
      %v420 = vadd.f32 %v248, %v419
      %v421 = vpop.f32.mrb[0].mxu0
      %422 = vdwg.mxu0
      %v423 = vmax.f32 %v361, 0.0
      %v424 = vmax.f32 %v364, 0.0
      %v425 = vmax.f32 %v369, 0.0
      %v426 = vmax.f32 %v372, 0.0
      %v427 = vmax.f32 %v377, 0.0
      %v428 = vmax.f32 %v380, 0.0
      %v429 = vmax.f32 %v385, 0.0
      %v430 = vmax.f32 %v388, 0.0
      %v431 = vmax.f32 %v393, 0.0
      %v432 = vmax.f32 %v396, 0.0
      %v433 = vmax.f32 %v401, 0.0
      %v434 = vmax.f32 %v404, 0.0
      %v435 = vmax.f32 %v409, 0.0
      %v436 = vmax.f32 %v412, 0.0
      %v437 = vmax.f32 %v417, 0.0
      %v438 = vmax.f32 %v420, 0.0
      %v439 = vpack.c.bf16 %v424, %v423
      %v440 = vpack.c.bf16 %v426, %v425
      %v441 = vpack.c.bf16 %v428, %v427
      %v442 = vpack.c.bf16 %v430, %v429
      %v443 = vpack.c.bf16 %v432, %v431
      %v444 = vpack.c.bf16 %v434, %v433
      %v445 = vpack.c.bf16 %v436, %v435
      %v446 = vpack.c.bf16 %v438, %v437
      %v447 = vld [vmem:[%s2] sm:$0xf]
      %v448 = vld [vmem:[%s2 + $0x4] sm:$0xf]
      %v449 = vld [vmem:[%s2 + $0x8] sm:$0xf]
      %v450 = vld [vmem:[%s2 + $0xc] sm:$0xf]
      %v451 = vlaneseq
      %v452 = vshrl.u32 %v451, 7
      %v453 = vsub.s32 1, %v452
      %v454 = vrot.slane %v224, %v453
      %v459 = vunpack.c.l.b16 %v447
      %v460 = vunpack.c.l.b16 %v448
      %v461 = vunpack.c.l.b16 %v449
      %v462 = vunpack.c.l.b16 %v450
      %v463 = vpack.c.b16 %v460, %v459
      %v464 = vpack.c.b16 %v462, %v461
      %v468 = vsel %vm301, %v439, 0
      %v471 = vsel %vm301, %v440, 0
      %v474 = vsel %vm301, %v441, 0
      %v477 = vsel %vm301, %v442, 0
      %v480 = vsel %vm301, %v443, 0
      %v483 = vsel %vm301, %v444, 0
      %v486 = vsel %vm301, %v445, 0
      %v489 = vsel %vm301, %v446, 0
      %491 = vmatprep.subr.bf16.mxu0 0
      %492 = vmatpush1.bf16.msra.mxu0 %v463
      %493 = vmatprep.subr.bf16.mxu0 0
      %494 = vmatpush1.bf16.msra.mxu0 %v464
      %495 = vmatprep.subr.bf16.mxu0 0
      %496 = vmatpush1.bf16.msra.mxu0 0
      %497 = vmatprep.subr.bf16.mxu0 0
      %498 = vmatpush1.bf16.msra.mxu0 0
      %499 = vmatprep.subr.bf16.mxu0 0
      %500 = vmatpush1.bf16.msra.mxu0 0
      %501 = vmatprep.subr.bf16.mxu0 0
      %502 = vmatpush1.bf16.msra.mxu0 0
      %503 = vmatprep.subr.bf16.mxu0 0
      %504 = vmatpush1.bf16.msra.mxu0 0
      %505 = vmatprep.subr.bf16.mxu0 0
      %506 = vmatpush1.bf16.msra.mxu0 0
      %507 = vmatprep.subr.bf16.mxu0 0
      %508 = vmatpush1.bf16.msra.mxu0 0
      %509 = vmatprep.subr.bf16.mxu0 0
      %510 = vmatpush1.bf16.msra.mxu0 0
      %511 = vmatprep.subr.bf16.mxu0 0
      %512 = vmatpush1.bf16.msra.mxu0 0
      %513 = vmatprep.subr.bf16.mxu0 0
      %514 = vmatpush1.bf16.msra.mxu0 0
      %515 = vmatprep.subr.bf16.mxu0 0
      %516 = vmatpush1.bf16.msra.mxu0 0
      %517 = vmatprep.subr.bf16.mxu0 0
      %518 = vmatpush1.bf16.msra.mxu0 0
      %519 = vmatprep.subr.bf16.mxu0 0
      %520 = vmatpush1.bf16.msra.mxu0 0
      %521 = vmatprep.subr.bf16.mxu0 0
      %522 = vmatpush1.bf16.msra.mxu0 0
      %523 = vmatprep.mubr.bf16.mxu0 0
      %524 = vmatmul.mubr.bf16.gmra.mrb[0].mxu0 %v468
      %v525 = vpop.f32.mrb[0].mxu0
      %v526 = vadd.f32 %v454, %v525
      %v527 = vpop.f32.mrb[0].mxu0
      %v528 = vpop.f32.mrb[0].mxu0
      %v529 = vadd.f32 %v454, %v528
      %v530 = vpop.f32.mrb[0].mxu0
      %531 = vmatprep.mubr.bf16.mxu0 0
      %532 = vmatmul.mubr.bf16.gmra.mrb[0].mxu0 %v471
      %v533 = vpop.f32.mrb[0].mxu0
      %v534 = vadd.f32 %v454, %v533
      %v535 = vpop.f32.mrb[0].mxu0
      %v536 = vpop.f32.mrb[0].mxu0
      %v537 = vadd.f32 %v454, %v536
      %v538 = vpop.f32.mrb[0].mxu0
      %539 = vmatprep.mubr.bf16.mxu0 0
      %540 = vmatmul.mubr.bf16.gmra.mrb[0].mxu0 %v474
      %v541 = vpop.f32.mrb[0].mxu0
      %v542 = vadd.f32 %v454, %v541
      %v543 = vpop.f32.mrb[0].mxu0
      %v544 = vpop.f32.mrb[0].mxu0
      %v545 = vadd.f32 %v454, %v544
      %v546 = vpop.f32.mrb[0].mxu0
      %547 = vmatprep.mubr.bf16.mxu0 0
      %548 = vmatmul.mubr.bf16.gmra.mrb[0].mxu0 %v477
      %v549 = vpop.f32.mrb[0].mxu0
      %v550 = vadd.f32 %v454, %v549
      %v551 = vpop.f32.mrb[0].mxu0
      %v552 = vpop.f32.mrb[0].mxu0
      %v553 = vadd.f32 %v454, %v552
      %v554 = vpop.f32.mrb[0].mxu0
      %555 = vmatprep.mubr.bf16.mxu0 0
      %556 = vmatmul.mubr.bf16.gmra.mrb[0].mxu0 %v480
      %v557 = vpop.f32.mrb[0].mxu0
      %v558 = vadd.f32 %v454, %v557
      %v559 = vpop.f32.mrb[0].mxu0
      %v560 = vpop.f32.mrb[0].mxu0
      %v561 = vadd.f32 %v454, %v560
      %v562 = vpop.f32.mrb[0].mxu0
      %563 = vmatprep.mubr.bf16.mxu0 0
      %564 = vmatmul.mubr.bf16.gmra.mrb[0].mxu0 %v483
      %v565 = vpop.f32.mrb[0].mxu0
      %v566 = vadd.f32 %v454, %v565
      %v567 = vpop.f32.mrb[0].mxu0
      %v568 = vpop.f32.mrb[0].mxu0
      %v569 = vadd.f32 %v454, %v568
      %v570 = vpop.f32.mrb[0].mxu0
      %571 = vmatprep.mubr.bf16.mxu0 0
      %572 = vmatmul.mubr.bf16.gmra.mrb[0].mxu0 %v486
      %v573 = vpop.f32.mrb[0].mxu0
      %v574 = vadd.f32 %v454, %v573
      %v575 = vpop.f32.mrb[0].mxu0
      %v576 = vpop.f32.mrb[0].mxu0
      %v577 = vadd.f32 %v454, %v576
      %v578 = vpop.f32.mrb[0].mxu0
      %579 = vmatprep.mubr.bf16.mxu0 0
      %580 = vmatmul.mubr.bf16.gmra.mrb[0].mxu0 %v489
      %v581 = vpop.f32.mrb[0].mxu0
      %v582 = vadd.f32 %v454, %v581
      %v583 = vpop.f32.mrb[0].mxu0
      %v584 = vpop.f32.mrb[0].mxu0
      %v585 = vadd.f32 %v454, %v584
      %v586 = vpop.f32.mrb[0].mxu0
      %587 = vdwg.mxu0
      %v588 = vmax.f32 %v526, 0.0
      %v589 = vmax.f32 %v529, 0.0
      %v590 = vmax.f32 %v534, 0.0
      %v591 = vmax.f32 %v537, 0.0
      %v592 = vmax.f32 %v542, 0.0
      %v593 = vmax.f32 %v545, 0.0
      %v594 = vmax.f32 %v550, 0.0
      %v595 = vmax.f32 %v553, 0.0
      %v596 = vmax.f32 %v558, 0.0
      %v597 = vmax.f32 %v561, 0.0
      %v598 = vmax.f32 %v566, 0.0
      %v599 = vmax.f32 %v569, 0.0
      %v600 = vmax.f32 %v574, 0.0
      %v601 = vmax.f32 %v577, 0.0
      %v602 = vmax.f32 %v582, 0.0
      %v603 = vmax.f32 %v585, 0.0
      %v604 = vld [vmem:[%s4] sm:$0x1]
      %v605 = vpack.c.bf16 %v589, %v588
      %v606 = vpack.c.bf16 %v591, %v590
      %v607 = vpack.c.bf16 %v593, %v592
      %v608 = vpack.c.bf16 %v595, %v594
      %v609 = vpack.c.bf16 %v597, %v596
      %v610 = vpack.c.bf16 %v599, %v598
      %v611 = vpack.c.bf16 %v601, %v600
      %v612 = vpack.c.bf16 %v603, %v602
      %v614 = vsel %vm301, %v604, 0
      %v617 = vsel %vm301, %v605, 0
      %v620 = vsel %vm301, %v606, 0
      %v623 = vsel %vm301, %v607, 0
      %v626 = vsel %vm301, %v608, 0
      %v629 = vsel %vm301, %v609, 0
      %v632 = vsel %vm301, %v610, 0
      %v635 = vsel %vm301, %v611, 0
      %v638 = vsel %vm301, %v612, 0
      %640 = vmatprep.subr.bf16.mxu0 0
      %641 = vmatpush1.bf16.xpose.msra.mxu0 %v617
      %642 = vmatprep.subr.bf16.mxu0 0
      %643 = vmatpush1.bf16.xpose.msra.mxu0 %v620
      %644 = vmatprep.subr.bf16.mxu0 0
      %645 = vmatpush1.bf16.xpose.msra.mxu0 %v623
      %646 = vmatprep.subr.bf16.mxu0 0
      %647 = vmatpush1.bf16.xpose.msra.mxu0 %v626
      %648 = vmatprep.subr.bf16.mxu0 0
      %649 = vmatpush1.bf16.xpose.msra.mxu0 %v629
      %650 = vmatprep.subr.bf16.mxu0 0
      %651 = vmatpush1.bf16.xpose.msra.mxu0 %v632
      %652 = vmatprep.subr.bf16.mxu0 0
      %653 = vmatpush1.bf16.xpose.msra.mxu0 %v635
      %654 = vmatprep.subr.bf16.mxu0 0
      %655 = vmatpush1.bf16.xpose.msra.mxu0 %v638
      %656 = vmatprep.subr.bf16.mxu0 0
      %657 = vmatpush1.bf16.xpose.msra.mxu0 0
      %658 = vmatprep.subr.bf16.mxu0 0
      %659 = vmatpush1.bf16.xpose.msra.mxu0 0
      %660 = vmatprep.subr.bf16.mxu0 0
      %661 = vmatpush1.bf16.xpose.msra.mxu0 0
      %662 = vmatprep.subr.bf16.mxu0 0
      %663 = vmatpush1.bf16.xpose.msra.mxu0 0
      %664 = vmatprep.subr.bf16.mxu0 0
      %665 = vmatpush1.bf16.xpose.msra.mxu0 0
      %666 = vmatprep.subr.bf16.mxu0 0
      %667 = vmatpush1.bf16.xpose.msra.mxu0 0
      %668 = vmatprep.subr.bf16.mxu0 0
      %669 = vmatpush1.bf16.xpose.msra.mxu0 0
      %670 = vmatprep.subr.bf16.mxu0 0
      %671 = vmatpush1.bf16.xpose.msra.mxu0 0
      %672 = vmatprep.mubr.bf16.mxu0 0
      %673 = vmatmul.mubr.bf16.gmra.mrb[0].mxu0 %v614
      %v674 = vpop.f32.mrb[0].mxu0
      %v675 = vadd.f32 0.0, %v674
      %v676 = vpop.f32.mrb[0].mxu0
      %v677 = vpop.f32.mrb[0].mxu0
      %v678 = vpop.f32.mrb[0].mxu0
      %679 = vdwg.mxu0
      %680 = vst [vmem:[%s222] sm:$0x1] %v675
      %p681 = scmp.lt.s32.totalorder %s16, 1
      %s682 = scalar_select %p681, %s16, 1
      %s683 = scalar_lea.vmem %s5, %s682
      // Predicated region
      $region41: #{fast_nn_forward.1} parent=39 // pred_check
        %p684 = pneg %p144
      $region42: #{fast_nn_forward.1} parent=39 // pred_check_branch
        %686 = sbr.rel (%p684) target = $region44
      $region43: #{fast_nn_forward.1} parent=39 // pred_region
        _
      $region44: #{fast_nn_forward.1} parent=39 // pred_fallthru
        _
    $region40: #{fast_nn_forward.1} parent=5 // pred_fallthru
      _
    %p687 = scmp.le.s32.totalorder 2, %s11
    // Predicated region
    $region45: #{fast_nn_forward.1} parent=5 // pred_check
      %p688 = pneg %p687
    $region46: #{fast_nn_forward.1} parent=5 // pred_check_branch
      %690 = sbr.rel (%p688) target = $region48
    $region47: #{fast_nn_forward.1} parent=5 // pred_region
      %s691 = ssub.s32 %s11, 2
      // Predicated region
      $region49: #{fast_nn_forward.1} parent=47 // pred_check
        %p692 = pneg %p150
      $region50: #{fast_nn_forward.1} parent=47 // pred_check_branch
        %694 = sbr.rel (%p692) target = $region52
      $region51: #{fast_nn_forward.1} parent=47 // pred_region
        %p695 = scmp.lt.s32.totalorder %s17, 1
        %s696 = scalar_select %p695, %s17, 1
        %s697 = scalar_lea.vmem %s5, %s696
      $region52: #{fast_nn_forward.1} parent=47 // pred_fallthru
        _
    $region48: #{fast_nn_forward.1} parent=5 // pred_fallthru
      _
  $region6: #{fast_nn_forward.1} parent=0 // loop_footer
    %s15 = sadd.s32 1, %s11
  $region7: #{fast_nn_forward.1} parent=0 // loop_footer_branch
    %10 = sbr.rel target = $region3
  $region8: #{fast_nn_forward.1} parent=0 // loop_exit
    _

</llo_original>
